<compile_context>
chip_gen: v5e
topology: v5e:2x2
jax: 0.10.0
libtpu: 0.0.40
codegen_flags: <defaults>
</compile_context>

<pallas_src>
import functools
import math

import jax
import jax.numpy as jnp
from jax import lax
from jax.experimental import pallas as pl
from jax.experimental.pallas import tpu as pltpu


def _layer_norm(x, gamma, beta, eps):
    mean = jnp.mean(x, axis=-1, keepdims=True)
    var = jnp.mean(jnp.square(x - mean), axis=-1, keepdims=True)  # biased, like nn.LayerNorm
    return (x - mean) * lax.rsqrt(var + eps) * gamma + beta


def _gelu_exact(x):
    # nn.GELU() default = exact erf GELU; 0.7071067811865476 = 1/sqrt(2)
    return 0.5 * x * (1.0 + lax.erf(x * 0.7071067811865476))


def _spec(block_shape, index_map, buffers=None):
    """BlockSpec with an optional explicit pipeline buffer count (graceful fallback)."""
    if buffers is not None and hasattr(pl, "Buffered"):
        try:
            return pl.BlockSpec(block_shape, index_map, pipeline_mode=pl.Buffered(buffers))
        except Exception:
            pass
    return pl.BlockSpec(block_shape, index_map)


# ----------------------- kernel 1: fused K/V projection (no Q) ------------------------
def kv_project_kernel(x_ref, wkv_ref, bkv_ref, k_ref, v_ref, *, num_heads):
    x = x_ref[0]                                                   # (tile, H) f32
    kv = jnp.dot(x.astype(wkv_ref.dtype), wkv_ref[...],
                 preferred_element_type=jnp.float32) + bkv_ref[0]  # (tile, 2H)
    tile, H = x.shape
    hs = H // num_heads
    k = kv[:, :H].reshape(tile, num_heads, hs)
    v = kv[:, H:].reshape(tile, num_heads, hs)
    # K stored head-major and pre-transposed (nh, hs, tile): the score matmul in K2 is
    # then a plain (tq,hs)@(hs,tk) with no per-step relayout; store is lane-dense.
    k_ref[0] = jnp.transpose(k, (1, 2, 0)).astype(k_ref.dtype)
    v_ref[0] = jnp.swapaxes(v, 0, 1).astype(v_ref.dtype)


# -------- kernel 2: Q proj + flash attention + W_O + LN1 + residual + MLP + LN2 --------
def attn_mlp_kernel(x_ref, k_ref, v_ref,
                    wq_ref, bq_ref, wo_ref, bo_ref, g1_ref, be1_ref,
                    w1_ref, b1_ref, w2_ref, b2_ref, g2_ref, be2_ref,
                    o_ref,
                    q_sc, m_sc, l_sc, acc_sc,
                    *, tq, tk, eps, fast_math):
    kv = pl.program_id(2)
    q_start = pl.program_id(1) * tq
    kv_start = kv * tk
    nh = k_ref.shape[1]
    hs = k_ref.shape[2]

    @pl.when(kv == 0)
    def _init():
        # Fused Q projection from the resident x tile (Q never touches HBM); the
        # 1/sqrt(head_size) scale is pre-folded into wq/bq by the wrapper.
        x = x_ref[0]
        q = jnp.dot(x.astype(wq_ref.dtype), wq_ref[...],
                    preferred_element_type=jnp.float32) + bq_ref[0]
        q_sc[...] = jnp.swapaxes(q.reshape(tq, nh, hs), 0, 1).astype(q_sc.dtype)
        m_sc[...] = jnp.full(m_sc.shape, -jnp.inf, m_sc.dtype)
        l_sc[...] = jnp.zeros(l_sc.shape, l_sc.dtype)
        acc_sc[...] = jnp.zeros(acc_sc.shape, acc_sc.dtype)

    # Causal block skip: kv tiles strictly above the diagonal contribute nothing.
    # Their HBM DMA is also skipped because the K/V index_maps clamp the block index.
    @pl.when(kv_start <= q_start + (tq - 1))
    def _attend():
        q = q_sc[...]                                             # (nh, tq, hs)
        k = k_ref[0]                                              # (nh, hs, tk)
        s = jnp.einsum("hqd,hdk->hqk", q, k,
                       preferred_element_type=jnp.float32)        # (nh, tq, tk)
        rows = q_start + lax.broadcasted_iota(jnp.int32, (tq, tk), 0)
        cols = kv_start + lax.broadcasted_iota(jnp.int32, (tq, tk), 1)
        s = jnp.where((cols <= rows)[None, :, :], s, -jnp.inf)

        m_prev = m_sc[...]
        m_new = jnp.maximum(m_prev, jnp.max(s, axis=-1, keepdims=True))
        # kv==0 is always processed and its column 0 is never masked (causal), so
        # m_new is finite and exp(-inf - m_new) = 0: no NaN.
        alpha = jnp.exp(m_prev - m_new)
        p = jnp.exp(s - m_new)
        l_sc[...] = alpha * l_sc[...] + jnp.sum(p, axis=-1, keepdims=True)
        acc_sc[...] = alpha * acc_sc[...] + jnp.einsum(
            "hqk,hkd->hqd", p.astype(v_ref.dtype), v_ref[0],
            preferred_element_type=jnp.float32)
        m_sc[...] = m_new

    @pl.when(kv == pl.num_programs(2) - 1)
    def _finalize():
        # One reciprocal per (head, row) on the small l tensor, then broadcast multiply.
        if fast_math:
            inv_l = pl.reciprocal(l_sc[...], approx=True)
        else:
            inv_l = 1.0 / l_sc[...]
        attn = acc_sc[...] * inv_l                                # (nh, tq, hs)
        attn = jnp.swapaxes(attn, 0, 1).reshape(tq, nh * hs)      # (tq, H)

        y = jnp.dot(attn.astype(wo_ref.dtype), wo_ref[...],
                    preferred_element_type=jnp.float32) + bo_ref[0]
        y = _layer_norm(y, g1_ref[0], be1_ref[0], eps)
        x1 = x_ref[0] + y                                         # residual 1

        h1 = jnp.dot(x1.astype(w1_ref.dtype), w1_ref[...],
                     preferred_element_type=jnp.float32) + b1_ref[0]
        h1 = _gelu_exact(h1)
        z = jnp.dot(h1.astype(w2_ref.dtype), w2_ref[...],
                    preferred_element_type=jnp.float32) + b2_ref[0]
        # dropout: identity (inference / eval mode)
        z = _layer_norm(z, g2_ref[0], be2_ref[0], eps)
        o_ref[0] = (x1 + z).astype(o_ref.dtype)                   # residual 2


# ------------------------------------ wrapper ------------------------------------------
def decoder_block_pallas(x, params, *, num_heads, eps=1e-5,
                         q_tile=128, kv_tile=256, mxu_dtype=jnp.bfloat16):
    B, S, H = x.shape
    assert H % num_heads == 0
    hs = H // num_heads
    mxu_dtype = jnp.dtype(mxu_dtype)
    (wqkv_t, bqkv, wo_t, bo, g1, be1, w1_t, b1, w2_t, b2, g2, be2) = params

    # Split W_QKV; fold 1/sqrt(head_size) into the Q weights/bias (free at runtime).
    inv_sqrt_hs = 1.0 / math.sqrt(hs)
    wq_s = (wqkv_t[:, :H] * inv_sqrt_hs).astype(mxu_dtype)        # (H, H)
    bq_s = bqkv[:, :H] * inv_sqrt_hs                              # (1, H)  f32
    wkv_s = wqkv_t[:, H:].astype(mxu_dtype)                       # (H, 2H)
    bkv = bqkv[:, H:]                                             # (1, 2H) f32
    wo_m, w1_m, w2_m = (w.astype(mxu_dtype) for w in (wo_t, w1_t, w2_t))

    tq = min(S, q_tile)
    tk = min(S, kv_tile)
    assert S % tq == 0 and S % tk == 0, "seq len must be divisible by tile sizes"
    n_q, n_kv = S // tq, S // tk

    # VMEM budget from actual tile/weight sizes, clamped to the detected chip capacity.
    try:
        vmem_cap = int(getattr(pltpu.get_tpu_info(), "vmem_capacity_bytes", 128 << 20))
    except Exception:
        vmem_cap = 128 << 20
    wsize = mxu_dtype.itemsize
    weight_bytes = (12 * H * H) * wsize + 16 * H * 4              # wq+wo+w1+w2+wkv + small params
    kv_tile_bytes = 2 * num_heads * hs * tk * wsize               # one K + one V tile
    act_bytes = 2 * 2 * (tq * H * 4) + 3 * kv_tile_bytes          # x/out double-buffered; K/V 3-deep
    scratch_bytes = num_heads * tq * (hs * (4 + wsize) + 8)
    epilogue_bytes = (4 * H + 6 * H) * tq * 4                     # MLP hidden + (tq,H) f32 temps
    need = 2 * weight_bytes + act_bytes + scratch_bytes + epilogue_bytes + (8 << 20)
    vmem_limit = int(min(max(need, 32 << 20), int(vmem_cap * 0.9)))

    # ---- pallas_call 1: K/V projection (K pre-transposed, head-major) ----
    k_h, v_h = pl.pallas_call(
        functools.partial(kv_project_kernel, num_heads=num_heads),
        out_shape=(jax.ShapeDtypeStruct((B, num_heads, hs, S), mxu_dtype),
                   jax.ShapeDtypeStruct((B, num_heads, S, hs), mxu_dtype)),
        grid=(B, n_q),
        in_specs=[
            pl.BlockSpec((1, tq, H), lambda b, i: (b, i, 0)),
            _spec((H, 2 * H), lambda b, i: (0, 0), buffers=1),
            _spec((1, 2 * H), lambda b, i: (0, 0), buffers=1),
        ],
        out_specs=(
            pl.BlockSpec((1, num_heads, hs, tq), lambda b, i: (b, 0, 0, i)),
            pl.BlockSpec((1, num_heads, tq, hs), lambda b, i: (b, 0, i, 0)),
        ),
        compiler_params=pltpu.CompilerParams(
            dimension_semantics=("parallel", "parallel"),
            vmem_limit_bytes=vmem_limit),
    )(x, wkv_s, bkv)

    # Causal clamp: kv blocks strictly above the diagonal repeat the last needed block
    # index, so Pallas skips their DMA entirely.
    def k_idx(b, qi, kv):
        return (b, 0, 0, jnp.minimum(kv, ((qi + 1) * tq - 1) // tk))

    def v_idx(b, qi, kv):
        return (b, 0, jnp.minimum(kv, ((qi + 1) * tq - 1) // tk), 0)

    cidx = lambda b, qi, kv: (0, 0)

    # ---- pallas_call 2: Q proj + flash attention + fused epilogue ----
    out = pl.pallas_call(
        functools.partial(attn_mlp_kernel, tq=tq, tk=tk, eps=float(eps),
                          fast_math=(mxu_dtype != jnp.dtype(jnp.float32))),
        out_shape=jax.ShapeDtypeStruct((B, S, H), jnp.float32),
        grid=(B, n_q, n_kv),
        in_specs=[
            pl.BlockSpec((1, tq, H), lambda b, qi, kv: (b, qi, 0)),   # x (resident per q tile)
            _spec((1, num_heads, hs, tk), k_idx, buffers=3),          # K^T tiles
            _spec((1, num_heads, tk, hs), v_idx, buffers=3),          # V tiles
            _spec((H, H), cidx, buffers=1),        # W_Q^T (scaled)
            _spec((1, H), cidx, buffers=1),        # b_Q  (scaled)
            _spec((H, H), cidx, buffers=1),        # W_O^T
            _spec((1, H), cidx, buffers=1),        # b_O
            _spec((1, H), cidx, buffers=1),        # gamma1
            _spec((1, H), cidx, buffers=1),        # beta1
            _spec((H, 4 * H), cidx, buffers=1),    # W1^T
            _spec((1, 4 * H), cidx, buffers=1),    # b1
            _spec((4 * H, H), cidx, buffers=1),    # W2^T
            _spec((1, H), cidx, buffers=1),        # b2
            _spec((1, H), cidx, buffers=1),        # gamma2
            _spec((1, H), cidx, buffers=1),        # beta2
        ],
        out_specs=pl.BlockSpec((1, tq, H), lambda b, qi, kv: (b, qi, 0)),
        scratch_shapes=[
            pltpu.VMEM((num_heads, tq, hs), mxu_dtype),     # Q (pre-scaled)
            pltpu.VMEM((num_heads, tq, 1), jnp.float32),    # running max  m
            pltpu.VMEM((num_heads, tq, 1), jnp.float32),    # running sum  l
            pltpu.VMEM((num_heads, tq, hs), jnp.float32),   # output accumulator
        ],
        compiler_params=pltpu.CompilerParams(
            dimension_semantics=("parallel", "parallel", "arbitrary"),
            vmem_limit_bytes=vmem_limit),
    )(x, k_h, v_h, wq_s, bq_s, wo_m, bo, g1, be1, w1_m, b1, w2_m, b2, g2, be2)
    return out


# ----------------------- pure-JAX reference (for verification) -----------------------
def decoder_block_ref(x, params, *, num_heads, eps=1e-5):
    (wqkv_t, bqkv, wo_t, bo, g1, be1, w1_t, b1, w2_t, b2, g2, be2) = params
    B, S, H = x.shape
    hs = H // num_heads

    qkv = x @ wqkv_t + bqkv[0]
    Q, K, V = qkv[..., :H], qkv[..., H:2 * H], qkv[..., 2 * H:]

    def split_heads(a):
        return a.reshape(B, S, num_heads, hs).transpose(0, 2, 1, 3)

    Qh, Kh, Vh = split_heads(Q), split_heads(K), split_heads(V)
    scores = jnp.einsum("bhqd,bhkd->bhqk", Qh, Kh)
    mask = jnp.arange(S)[None, :] <= jnp.arange(S)[:, None]
    scores = jnp.where(mask[None, None], scores, -jnp.inf) / math.sqrt(hs)
    p = jax.nn.softmax(scores, axis=-1)
    av = jnp.einsum("bhqk,bhkd->bqhd", p, Vh).reshape(B, S, H)
    y = av @ wo_t + bo[0]

    def ln(a, g, b):
        mu = a.mean(-1, keepdims=True)
        var = ((a - mu) ** 2).mean(-1, keepdims=True)
        return (a - mu) / jnp.sqrt(var + eps) * g[0] + b[0]

    y = ln(y, g1, be1)
    x1 = x + y
    h1 = _gelu_exact(x1 @ w1_t + b1[0])
    z = h1 @ w2_t + b2[0]
    z = ln(z, g2, be2)
    return x1 + z


def init_params(key, hidden_size):
    H = hidden_size
    ks = jax.random.split(key, 10)
    s = 0.05

    def lin(kw, kb, in_dim, out_dim):
        # PyTorch nn.Linear stores (out, in); pre-transpose to (in, out) for x @ W.
        w = jax.random.normal(kw, (out_dim, in_dim), jnp.float32).T * s
        b = jax.random.normal(kb, (1, out_dim), jnp.float32) * s
        return w, b

    wqkv_t, bqkv = lin(ks[0], ks[1], H, 3 * H)
    wo_t, bo = lin(ks[2], ks[3], H, H)
    w1_t, b1 = lin(ks[4], ks[5], H, 4 * H)
    w2_t, b2 = lin(ks[6], ks[7], 4 * H, H)
    g1 = 1.0 + 0.1 * jax.random.normal(ks[8], (1, H), jnp.float32)
    be1 = 0.1 * jax.random.normal(ks[9], (1, H), jnp.float32)
    g2 = jnp.ones((1, H), jnp.float32)
    be2 = jnp.zeros((1, H), jnp.float32)
    return (wqkv_t, bqkv, wo_t, bo, g1, be1, w1_t, b1, w2_t, b2, g2, be2)


if __name__ == "__main__":
    def run_check(B, S, H, NH, q_tile, kv_tile, mxu_dtype, atol, rtol, tag):
        key = jax.random.PRNGKey(0)
        kx, kp = jax.random.split(key)
        x = jax.random.normal(kx, (B, S, H), jnp.float32)
        params = init_params(kp, H)
        out = decoder_block_pallas(x, params, num_heads=NH, eps=1e-5,
                                   q_tile=q_tile, kv_tile=kv_tile, mxu_dtype=mxu_dtype)
        out = jax.block_until_ready(out)
        with jax.default_matmul_precision("highest"):
            ref = decoder_block_ref(x, params, num_heads=NH, eps=1e-5)
        assert out.shape == (B, S, H)
        err = float(jnp.max(jnp.abs(out - ref)))
        assert bool(jnp.allclose(out, ref, atol=atol, rtol=rtol)), \
            f"{tag}: mismatch vs reference, max abs err = {err}"

    # 1) small shapes (batch=2, seq=8, hidden=32, heads=4), f32 matmuls: checks the fused math
    run_check(2, 8, 32, 4, 8, 8, jnp.float32, 5e-2, 5e-2, "small-f32")
    # 2) multi-tile, f32: validates online softmax across kv tiles, causal block skip and
    #    the clamped (DMA-skipping) K/V index maps
    run_check(2, 256, 128, 4, 128, 128, jnp.float32, 5e-2, 5e-2, "tiled-f32")
    # 3) multi-tile, default bf16 MXU path (looser tolerance: bf16 matmul rounding)
    run_check(2, 256, 128, 4, 128, 128, jnp.bfloat16, 1e-1, 1e-1, "tiled-bf16")

    print("KERNEL_OK")
</pallas_src>

<mosaic_0001>
module attributes {stable_mosaic.version = 11 : i64} {
  func.func @kv_project_kernel(%arg0: i32, %arg1: i32, %arg2: memref<1x8x32xf32, #tpu.memory_space<vmem>>, %arg3: memref<32x64xf32, #tpu.memory_space<vmem>>, %arg4: memref<1x64xf32, #tpu.memory_space<vmem>>, %arg5: memref<1x4x8x8xf32, #tpu.memory_space<vmem>>, %arg6: memref<1x4x8x8xf32, #tpu.memory_space<vmem>>) attributes {dimension_semantics = [#tpu.dimension_semantics<parallel>, #tpu.dimension_semantics<parallel>], iteration_bounds = array<i64: 2, 1>, scalar_prefetch = 0 : i64, scratch_operands = 0 : i64, tpu.core_type = #tpu.core_type<tc>, window_params = [{transform_indices = @transform_0, window_bounds = array<i64: 1, 8, 32>}, {pipeline_mode = #tpu.pipeline_mode<synchronous>, transform_indices = @transform_1, window_bounds = array<i64: 32, 64>}, {pipeline_mode = #tpu.pipeline_mode<synchronous>, transform_indices = @transform_2, window_bounds = array<i64: 1, 64>}, {transform_indices = @transform_3, window_bounds = array<i64: 1, 4, 8, 8>}, {transform_indices = @transform_4, window_bounds = array<i64: 1, 4, 8, 8>}]} {
    %c0 = arith.constant 0 : index
    %c0_0 = arith.constant 0 : index
    %c0_1 = arith.constant 0 : index
    %0 = vector.load %arg2[%c0, %c0_0, %c0_1] : memref<1x8x32xf32, #tpu.memory_space<vmem>>, vector<1x8x32xf32>
    %1 = vector.shape_cast %0 : vector<1x8x32xf32> to vector<8x32xf32>
    %c0_2 = arith.constant 0 : index
    %c0_3 = arith.constant 0 : index
    %2 = vector.load %arg3[%c0_2, %c0_3] : memref<32x64xf32, #tpu.memory_space<vmem>>, vector<32x64xf32>
    %cst = arith.constant dense<0.000000e+00> : vector<8x64xf32>
    %3 = tpu.matmul %1, %2, %cst {dimension_numbers = #tpu.dot_dimension_numbers<[1], [0], [0], [1], [0, 0, 1, 1], [], []>} : vector<8x32xf32>, vector<32x64xf32>, vector<8x64xf32> -> vector<8x64xf32>
    %c0_4 = arith.constant 0 : index
    %c0_5 = arith.constant 0 : index
    %4 = vector.load %arg4[%c0_4, %c0_5] : memref<1x64xf32, #tpu.memory_space<vmem>>, vector<1x64xf32>
    %5 = vector.shape_cast %4 : vector<1x64xf32> to vector<64xf32>
    %6 = vector.shape_cast %5 : vector<64xf32> to vector<1x64xf32>
    %7 = vector.broadcast %6 : vector<1x64xf32> to vector<8x64xf32>
    %8 = arith.addf %3, %7 : vector<8x64xf32>
    %9 = vector.extract_strided_slice %8 {offsets = [0, 0], sizes = [8, 32], strides = [1, 1]} : vector<8x64xf32> to vector<8x32xf32>
    %10 = vector.shape_cast %9 : vector<8x32xf32> to vector<8x4x8xf32>
    %11 = vector.extract_strided_slice %8 {offsets = [0, 32], sizes = [8, 32], strides = [1, 1]} : vector<8x64xf32> to vector<8x32xf32>
    %12 = vector.shape_cast %11 : vector<8x32xf32> to vector<8x4x8xf32>
    %13 = tpu.transpose %10, [1, 2, 0] : vector<8x4x8xf32> -> vector<4x8x8xf32>
    %c0_6 = arith.constant 0 : index
    %c0_7 = arith.constant 0 : index
    %c0_8 = arith.constant 0 : index
    %c0_9 = arith.constant 0 : index
    %14 = vector.load %arg5[%c0_6, %c0_7, %c0_8, %c0_9] : memref<1x4x8x8xf32, #tpu.memory_space<vmem>>, vector<1x4x8x8xf32>
    %15 = vector.shape_cast %14 : vector<1x4x8x8xf32> to vector<4x8x8xf32>
    %16 = vector.shape_cast %13 : vector<4x8x8xf32> to vector<1x4x8x8xf32>
    tpu.vector_store %arg5[%c0_6, %c0_7, %c0_8, %c0_9], %16 {strides = array<i32>} : memref<1x4x8x8xf32, #tpu.memory_space<vmem>>, vector<1x4x8x8xf32>,
    %17 = tpu.transpose %12, [1, 0, 2] : vector<8x4x8xf32> -> vector<4x8x8xf32>
    %c0_10 = arith.constant 0 : index
    %c0_11 = arith.constant 0 : index
    %c0_12 = arith.constant 0 : index
    %c0_13 = arith.constant 0 : index
    %18 = vector.load %arg6[%c0_10, %c0_11, %c0_12, %c0_13] : memref<1x4x8x8xf32, #tpu.memory_space<vmem>>, vector<1x4x8x8xf32>
    %19 = vector.shape_cast %18 : vector<1x4x8x8xf32> to vector<4x8x8xf32>
    %20 = vector.shape_cast %17 : vector<4x8x8xf32> to vector<1x4x8x8xf32>
    tpu.vector_store %arg6[%c0_10, %c0_11, %c0_12, %c0_13], %20 {strides = array<i32>} : memref<1x4x8x8xf32, #tpu.memory_space<vmem>>, vector<1x4x8x8xf32>,
    return
  }
  func.func @transform_0(%arg0: i32, %arg1: i32) -> (i32, i32, i32) {
    %c0_i32 = arith.constant 0 : i32
    %c0_i32_0 = arith.constant 0 : i32
    return %arg0, %arg1, %c0_i32 : i32, i32, i32
  }
  func.func @transform_1(%arg0: i32, %arg1: i32) -> (i32, i32) {
    %c0_i32 = arith.constant 0 : i32
    %c0_i32_0 = arith.constant 0 : i32
    %c0_i32_1 = arith.constant 0 : i32
    return %c0_i32, %c0_i32_0 : i32, i32
  }
  func.func @transform_2(%arg0: i32, %arg1: i32) -> (i32, i32) {
    %c0_i32 = arith.constant 0 : i32
    %c0_i32_0 = arith.constant 0 : i32
    %c0_i32_1 = arith.constant 0 : i32
    return %c0_i32, %c0_i32_0 : i32, i32
  }
  func.func @transform_3(%arg0: i32, %arg1: i32) -> (i32, i32, i32, i32) {
    %c0_i32 = arith.constant 0 : i32
    %c0_i32_0 = arith.constant 0 : i32
    %c0_i32_1 = arith.constant 0 : i32
    return %arg0, %c0_i32, %c0_i32_0, %arg1 : i32, i32, i32, i32
  }
  func.func @transform_4(%arg0: i32, %arg1: i32) -> (i32, i32, i32, i32) {
    %c0_i32 = arith.constant 0 : i32
    %c0_i32_0 = arith.constant 0 : i32
    %c0_i32_1 = arith.constant 0 : i32
    return %arg0, %c0_i32, %arg1, %c0_i32_0 : i32, i32, i32, i32
  }
}

</mosaic_0001>

<llo_original>
// kernel: tpu_custom_call.1
$region0: #{tpu_custom_call.1}
  #allocation0 [shape = 'u32[]', space=smem, size = 0x4, offset = 0x4, fixed_abs, tag = 'smem constant byte address 0x4 - core index']
  #allocation1 [shape = 'u32[72,128]{1,0:T(1,128)}', space=vmem, size = 0x9000, scoped, tag = 'internal scratch']
  %s0 = inlined_call_operand.hbm [shape: f32[2,8,32], index: 0, kind: input, shape index: {}]
  %s1 = inlined_call_operand.hbm [shape: f32[32,64], index: 1, kind: input, shape index: {}]
  %s2 = inlined_call_operand.vmem [shape: f32[1,64], index: 2, kind: input, shape index: {}]
  %s3 = inlined_call_operand.hbm [shape: f32[2,4,8,8], index: 3, kind: output, shape index: {0}]
  %s4 = inlined_call_operand.hbm [shape: f32[2,4,8,8], index: 4, kind: output, shape index: {1}]
  %5 = xla_tuple %s3, %s4
  %s6 = sld [smem:[#allocation0]]
  $region61: #{tpu_custom_call.1} parent=0
    _
  %s8 = ssub.s32 1, %s6
  %s9 = scalar_select 0, %s8, %s6
  $region1: #{tpu_custom_call.1} parent=0
    #allocation2 [shape = 'u8[8192]{0}', space=vmem, size = 0x2000, scoped, tag = 'input window, operand 0']
    #allocation3 [shape = 's32[2]{0}', space=sflag, size = 0x8, scoped, tag = 'scoped memory for tpu_custom_call.1']
    #allocation4 [shape = 's32[2]{0}', space=sflag, size = 0x8, scoped, tag = 'scoped memory for tpu_custom_call.1']
    #allocation5 [shape = 'u8[16384]{0}', space=vmem, size = 0x4000, scoped, tag = 'input window, operand 1, single buffered']
    #allocation6 [shape = 's32[1]{0}', space=sflag, size = 0x4, scoped, tag = 'scoped memory for tpu_custom_call.1']
    #allocation7 [shape = 'u8[32768]{0}', space=vmem, size = 0x8000, scoped, tag = 'output window, operand 0']
    #allocation8 [shape = 'u8[32768]{0}', space=vmem, size = 0x8000, scoped, tag = 'output window, operand 1']
    #allocation9 [shape = 's32[2]{0}', space=sflag, size = 0x8, scoped, tag = 'scoped memory for tpu_custom_call.1']
    %10 = vsyncpa [#allocation3], 0
    %s11 = scalar_lea.sflag [#allocation3], 1
    %12 = vsyncpa %s11, 0
    %13 = vsyncpa [#allocation6], 0
    %14 = vsyncpa [#allocation4], 0
    %s15 = scalar_lea.sflag [#allocation4], 1
    %16 = vsyncpa %s15, 0
    %17 = vsyncpa [#allocation9], 0
    %s18 = scalar_lea.sflag [#allocation9], 1
    %19 = vsyncpa %s18, 0
    loop: start=0, step=1, limit=4
    $region2: #{tpu_custom_call.1} parent=1 // loop_pre_header
      _
    $region3: #{tpu_custom_call.1} parent=1 // loop_header
      %s21 = sphi 0, %s25
      %p22 = scmp.ge.s32.totalorder %s21, 4
      %s28 = sphi 0, %s40
      %s29 = sphi 0, %s36
      %s30 = sphi 0, %s28
      %s31 = sphi 0, %s29
      %s32 = sphi 0, %s30
      %s33 = sphi 0, %s31
      %s45 = sphi 0, %s47
      %s48 = sphi 0, %s45
      %s49 = sphi 0, %s48
      %s65 = sphi 0, %s49
      %s69 = sphi 0, %s69
      %s71 = sphi 0, %s69
      %s72 = sphi 0, %s71
      %s86 = sphi 0, %s72
      %s90 = sphi 0, %s90
      %s92 = sphi 0, %s90
      %s93 = sphi 0, %s92
      %s107 = sphi 0, %s93
      %s115 = sphi 0, %s117
      %s118 = sphi 0, %s115
      %s119 = sphi 0, %s118
      %s135 = sphi 0, %s119
      %s143 = sphi 0, %s145
      %s146 = sphi 0, %s143
      %s147 = sphi 0, %s146
      %s163 = sphi 0, %s147
    $region4: #{tpu_custom_call.1} parent=1 // loop_header_branch
      %24 = sbr.rel (%p22) target = $region8
    $region5: #{tpu_custom_call.1} parent=1 // loop_body
      %s26 = ssub.s32 %s21, 1
      %s27 = ssub.s32 %s21, 2
      %s34 = sadd.s32 1, %s29
      %p35 = scmp.ge.s32.totalorder %s34, 1
      %s36 = scalar_select %p35, 0, %s34
      %s37 = sadd.s32 1, %s28
      %s38 = scalar_select %p35, %s37, %s28
      %p39 = scmp.ge.s32.totalorder %s38, 2
      %s40 = scalar_select %p39, 0, %s38
      %s41 = ssub.s32 %s28, %s40
      %s42 = ssub.s32 %s29, %s36
      %s43 = sor.u32 %s41, %s42
      %p44 = scmp.eq.s32.totalorder %s43, 0
      %s46 = sadd.s32 %s45, 1
      %s47 = scalar_select %p44, %s45, %s46
      %p50 = pneg %p44
      %p51 = scmp.eq.s32.totalorder %s21, 1
      %p52 = por %p50, %p51
      %p53 = scmp.ne.s32.totalorder %s45, %s48
      %p54 = scmp.eq.s32.totalorder %s21, 0
      %p55 = por %p53, %p54
      %p56 = scmp.ne.s32.totalorder %s45, %s48
      %p57 = scmp.eq.s32.totalorder %s26, 1
      %p58 = por %p56, %p57
      %p59 = scmp.ne.s32.totalorder %s48, %s49
      %p60 = scmp.eq.s32.totalorder %s26, 0
      %p61 = por %p59, %p60
      %p62 = scmp.ne.s32.totalorder %s48, %s49
      %p63 = scmp.eq.s32.totalorder %s27, 1
      %p64 = por %p62, %p63
      %p66 = scmp.ne.s32.totalorder %s49, %s65
      %p67 = scmp.eq.s32.totalorder %s27, 0
      %p68 = por %p66, %p67
      %s70 = sadd.s32 %s69, 1
      %p73 = scmp.eq.s32.totalorder %s21, 1
      %p74 = scmp.ne.s32.totalorder %s69, %s71
      %p75 = scmp.eq.s32.totalorder %s21, 0
      %p76 = por %p74, %p75
      %p77 = scmp.ne.s32.totalorder %s69, %s71
      %p78 = scmp.eq.s32.totalorder %s26, 1
      %p79 = por %p77, %p78
      %p80 = scmp.ne.s32.totalorder %s71, %s72
      %p81 = scmp.eq.s32.totalorder %s26, 0
      %p82 = por %p80, %p81
      %p83 = scmp.ne.s32.totalorder %s71, %s72
      %p84 = scmp.eq.s32.totalorder %s27, 1
      %p85 = por %p83, %p84
      %p87 = scmp.ne.s32.totalorder %s72, %s86
      %p88 = scmp.eq.s32.totalorder %s27, 0
      %p89 = por %p87, %p88
      %s91 = sadd.s32 %s90, 1
      %p94 = scmp.eq.s32.totalorder %s21, 1
      %p95 = scmp.ne.s32.totalorder %s90, %s92
      %p96 = scmp.eq.s32.totalorder %s21, 0
      %p97 = por %p95, %p96
      %p98 = scmp.ne.s32.totalorder %s90, %s92
      %p99 = scmp.eq.s32.totalorder %s26, 1
      %p100 = por %p98, %p99
      %p101 = scmp.ne.s32.totalorder %s92, %s93
      %p102 = scmp.eq.s32.totalorder %s26, 0
      %p103 = por %p101, %p102
      %p104 = scmp.ne.s32.totalorder %s92, %s93
      %p105 = scmp.eq.s32.totalorder %s27, 1
      %p106 = por %p104, %p105
      %p108 = scmp.ne.s32.totalorder %s93, %s107
      %p109 = scmp.eq.s32.totalorder %s27, 0
      %p110 = por %p108, %p109
      %s111 = ssub.s32 %s28, %s40
      %s112 = ssub.s32 %s29, %s36
      %s113 = sor.u32 %s111, %s112
      %p114 = scmp.eq.s32.totalorder %s113, 0
      %s116 = sadd.s32 %s115, 1
      %s117 = scalar_select %p114, %s115, %s116
      %p120 = pneg %p114
      %p121 = scmp.eq.s32.totalorder %s21, 1
      %p122 = por %p120, %p121
      %p123 = scmp.ne.s32.totalorder %s115, %s118
      %p124 = scmp.eq.s32.totalorder %s21, 0
      %p125 = por %p123, %p124
      %p126 = scmp.ne.s32.totalorder %s115, %s118
      %p127 = scmp.eq.s32.totalorder %s26, 1
      %p128 = por %p126, %p127
      %p129 = scmp.ne.s32.totalorder %s118, %s119
      %p130 = scmp.eq.s32.totalorder %s26, 0
      %p131 = por %p129, %p130
      %p132 = scmp.ne.s32.totalorder %s118, %s119
      %p133 = scmp.eq.s32.totalorder %s27, 1
      %p134 = por %p132, %p133
      %p136 = scmp.ne.s32.totalorder %s119, %s135
      %p137 = scmp.eq.s32.totalorder %s27, 0
      %p138 = por %p136, %p137
      %s139 = ssub.s32 %s28, %s40
      %s140 = ssub.s32 %s29, %s36
      %s141 = sor.u32 %s139, %s140
      %p142 = scmp.eq.s32.totalorder %s141, 0
      %s144 = sadd.s32 %s143, 1
      %s145 = scalar_select %p142, %s143, %s144
      %p148 = pneg %p142
      %p149 = scmp.eq.s32.totalorder %s21, 1
      %p150 = por %p148, %p149
      %p151 = scmp.ne.s32.totalorder %s143, %s146
      %p152 = scmp.eq.s32.totalorder %s21, 0
      %p153 = por %p151, %p152
      %p154 = scmp.ne.s32.totalorder %s143, %s146
      %p155 = scmp.eq.s32.totalorder %s26, 1
      %p156 = por %p154, %p155
      %p157 = scmp.ne.s32.totalorder %s146, %s147
      %p158 = scmp.eq.s32.totalorder %s26, 0
      %p159 = por %p157, %p158
      %p160 = scmp.ne.s32.totalorder %s146, %s147
      %p161 = scmp.eq.s32.totalorder %s27, 1
      %p162 = por %p160, %p161
      %p164 = scmp.ne.s32.totalorder %s147, %s163
      %p165 = scmp.eq.s32.totalorder %s27, 0
      %p166 = por %p164, %p165
      %p167 = scmp.le.s32.totalorder 1, %s21
      %p168 = scmp.lt.s32.totalorder %s21, 3
      %p169 = pnand %p167, %p168
      %p170 = pneg %p169
      // Predicated region
      $region9: #{tpu_custom_call.1} parent=5 // pred_check
        _
      $region10: #{tpu_custom_call.1} parent=5 // pred_check_branch
        %172 = sbr.rel (%p169) target = $region12
      $region11: #{tpu_custom_call.1} parent=5 // pred_region
        %s173 = ssub.s32 %s21, 1
        // Predicated region
        $region13: #{tpu_custom_call.1} parent=11 // pred_check
          %p174 = pneg %p82
        $region14: #{tpu_custom_call.1} parent=11 // pred_check_branch
          %176 = sbr.rel (%p174) target = $region16
        $region15: #{tpu_custom_call.1} parent=11 // pred_region
          %178 = vsyncadd [#allocation6], 0
          %s179 = sshll.u32 %s1, 4
          %s180 = int_to_ptr.hbm [resolvable:$true] %s179
          %s181 = sshll.u32 [#allocation5], 4
          %s182 = int_to_ptr.vmem [resolvable:$true] %s181
          %187 = dma.hbm_to_vmem [thread:$0]  %s180, 512, %s182, [#allocation6], 128, 128, 8
        $region16: #{tpu_custom_call.1} parent=11 // pred_fallthru
          _
        // Predicated region
        $region17: #{tpu_custom_call.1} parent=11 // pred_check
          %p188 = pneg %p103
        $region18: #{tpu_custom_call.1} parent=11 // pred_check_branch
          %190 = sbr.rel (%p188) target = $region20
        $region19: #{tpu_custom_call.1} parent=11 // pred_region
          _
        $region20: #{tpu_custom_call.1} parent=11 // pred_fallthru
          _
      $region12: #{tpu_custom_call.1} parent=5 // pred_fallthru
        _
      %p191 = scmp.lt.s32.totalorder %s21, 2
      // Predicated region
      $region21: #{tpu_custom_call.1} parent=5 // pred_check
        %p192 = pneg %p191
      $region22: #{tpu_custom_call.1} parent=5 // pred_check_branch
        %194 = sbr.rel (%p192) target = $region24
      $region23: #{tpu_custom_call.1} parent=5 // pred_region
        // Predicated region
        $region25: #{tpu_custom_call.1} parent=23 // pred_check
          %p195 = pneg %p55
        $region26: #{tpu_custom_call.1} parent=23 // pred_check_branch
          %197 = sbr.rel (%p195) target = $region28
        $region27: #{tpu_custom_call.1} parent=23 // pred_region
          %s198 = sand.u32 %s45, 1
          %s199 = scalar_lea.sflag [#allocation3], %s198
          %s200 = sand.u32 %s45, 1
          %s201 = smul.addr %s200, 8
          %s202 = scalar_lea.vmem [#allocation2], %s201
          %204 = vsyncadd %s199, 0
          %s205 = sadd.s32 %s29, %s28
          %s206 = smul.addr %s205, 8
          %s207 = scalar_lea.hbm %s0, %s206
          %s209 = sshll.u32 %s207, 4
          %s210 = int_to_ptr.hbm [resolvable:$true] %s209
          %s211 = sshll.u32 %s202, 4
          %s212 = int_to_ptr.vmem [resolvable:$true] %s211
          %214 = dma.hbm_to_vmem [thread:$0]  %s210, 128, %s212, %s199
        $region28: #{tpu_custom_call.1} parent=23 // pred_fallthru
          _
      $region24: #{tpu_custom_call.1} parent=5 // pred_fallthru
        _
      %p215 = scmp.le.s32.totalorder 1, %s21
      %p216 = scmp.lt.s32.totalorder %s21, 3
      %p217 = pnand %p215, %p216
      %p218 = pneg %p217
      // Predicated region
      $region29: #{tpu_custom_call.1} parent=5 // pred_check
        _
      $region30: #{tpu_custom_call.1} parent=5 // pred_check_branch
        %220 = sbr.rel (%p217) target = $region32
      $region31: #{tpu_custom_call.1} parent=5 // pred_region
        %s221 = ssub.s32 %s21, 1
        %s222 = sand.u32 %s48, 1
        %s223 = scalar_lea.sflag [#allocation3], %s222
        %s224 = sand.u32 %s48, 1
        %s225 = smul.addr %s224, 8
        %s226 = scalar_lea.vmem [#allocation2], %s225
        // Predicated region
        $region33: #{tpu_custom_call.1} parent=31 // pred_check
          %p227 = pneg %p61
        $region34: #{tpu_custom_call.1} parent=31 // pred_check_branch
          %229 = sbr.rel (%p227) target = $region36
        $region35: #{tpu_custom_call.1} parent=31 // pred_region
          %231 = dma.done %s223, 128
        $region36: #{tpu_custom_call.1} parent=31 // pred_fallthru
          _
        // Predicated region
        $region37: #{tpu_custom_call.1} parent=31 // pred_check
          %p232 = pneg %p82
        $region38: #{tpu_custom_call.1} parent=31 // pred_check_branch
          %234 = sbr.rel (%p232) target = $region40
        $region39: #{tpu_custom_call.1} parent=31 // pred_region
          %236 = dma.done [#allocation6], 512
        $region40: #{tpu_custom_call.1} parent=31 // pred_fallthru
          _
        %s237 = sand.u32 %s48, 1
        %s238 = scalar_lea.sflag [#allocation3], %s237
        %s239 = sand.u32 %s48, 1
        %s240 = smul.addr %s239, 8
        %s241 = scalar_lea.vmem [#allocation2], %s240
        %p242 = pneg %p61
        %p243 = pneg %p58
        %p244 = pneg %p82
        %p245 = pneg %p79
        %p246 = pneg %p103
        %p247 = pneg %p100
        %p248 = pneg %p131
        %p249 = pneg %p128
        %s250 = sand.u32 %s118, 1
        %s251 = scalar_lea.sflag [#allocation4], %s250
        %s252 = sand.u32 %s118, 1
        %s253 = smul.addr %s252, 32
        %s254 = scalar_lea.vmem [#allocation7], %s253
        %p255 = pneg %p159
        %p256 = pneg %p156
        %s257 = sand.u32 %s146, 1
        %s258 = scalar_lea.sflag [#allocation9], %s257
        %s259 = sand.u32 %s146, 1
        %s260 = smul.addr %s259, 32
        %s261 = scalar_lea.vmem [#allocation8], %s260
        %v262 = vld [vmem:[%s226] sm:$0xff]
        %v263 = vld [vmem:[#allocation5] sm:$0xff]
        %v264 = vld [vmem:[#allocation5 + $0x8] sm:$0xff]
        %v265 = vld [vmem:[#allocation5 + $0x10] sm:$0xff]
        %v266 = vld [vmem:[#allocation5 + $0x18] sm:$0xff]
        %v267 = vld [vmem:[%s2] sm:$0x1]
        %v269 = vperm.slane %v267, 0
        %vm271 = vcmask 261120
        %v273 = vsel %vm271, %v262, 0
        %275 = vmatpush.msra.mxu0 0.0
        %276 = vmatpush.msra.mxu0 0.0
        %277 = vmatpush.msra.mxu0 0.0
        %278 = vmatpush.msra.mxu0 0.0
        %279 = vmatpush.msra.mxu0 0.0
        %280 = vmatpush.msra.mxu0 0.0
        %281 = vmatpush.msra.mxu0 0.0
        %282 = vmatpush.msra.mxu0 0.0
        %283 = vmatpush.msra.mxu0 0.0
        %284 = vmatpush.msra.mxu0 0.0
        %285 = vmatpush.msra.mxu0 0.0
        %286 = vmatpush.msra.mxu0 0.0
        %287 = vmatpush.msra.mxu0 %v266
        %288 = vmatpush.msra.mxu0 %v265
        %289 = vmatpush.msra.mxu0 %v264
        %290 = vmatpush.msra.mxu0 %v263
        %291 = vmatmul.f32.gmra.mxu0 %v273
        %v292 = vpop.f32.mrf.mxu0
        %v293 = vadd.f32 %v269, %v292
        %294 = vdwg.mxu0
        %296 = vrot.lane.b32.xlu0 %v293, 120
        %v297 = vpop.permute.xlu0 %296
        %299 = vrot.lane.b32.xlu0 %v293, 112
        %v300 = vpop.permute.xlu0 %299
        %302 = vrot.lane.b32.xlu0 %v293, 104
        %v303 = vpop.permute.xlu0 %302
        %v305 = vrot.slane %v300, 4
        %vm306 = vcmask 1047556
        %v307 = vsel %vm306, %v305, %v293
        %v308 = vrot.slane %v293, 4
        %v309 = vsel %vm306, %v300, %v308
        %v311 = vunpack.c.l.s4 1983009808
        %v312 = vunpack.c.0.s8 %v311
        %v313 = vperm.slane %v307, %v312
        %v315 = vunpack.c.l.s4 1983009808
        %v316 = vunpack.c.0.s8 %v315
        %v317 = vperm.slane %v309, %v316
        %v318 = vrot.slane %v303, 4
        %v319 = vsel %vm306, %v318, %v297
        %v320 = vrot.slane %v297, 4
        %v321 = vsel %vm306, %v303, %v320
        %v323 = vunpack.c.l.s4 1983009808
        %v324 = vunpack.c.0.s8 %v323
        %v325 = vperm.slane %v319, %v324
        %v327 = vunpack.c.l.s4 1983009808
        %v328 = vunpack.c.0.s8 %v327
        %v329 = vperm.slane %v321, %v328
        %v330 = vrot.slane %v325, 4
        %v331 = vsel %vm306, %v330, %v313
        %v332 = vrot.slane %v313, 4
        %v333 = vsel %vm306, %v325, %v332
        %v335 = vunpack.c.l.s4 1934713408
        %v336 = vunpack.c.0.s8 %v335
        %v337 = vperm.slane %v331, %v336
        %v339 = vunpack.c.l.s4 1934713408
        %v340 = vunpack.c.0.s8 %v339
        %v341 = vperm.slane %v333, %v340
        %v342 = vrot.slane %v329, 4
        %v343 = vsel %vm306, %v342, %v317
        %v344 = vrot.slane %v317, 4
        %v345 = vsel %vm306, %v329, %v344
        %v347 = vunpack.c.l.s4 1934713408
        %v348 = vunpack.c.0.s8 %v347
        %v349 = vperm.slane %v343, %v348
        %v351 = vunpack.c.l.s4 1934713408
        %v352 = vunpack.c.0.s8 %v351
        %v353 = vperm.slane %v345, %v352
        %v354 = vrot.slane %v337, 4
        %v355 = vsel %vm306, 0.0, %v354
        %v356 = vrot.slane %v341, 4
        %v357 = vsel %vm306, 0.0, %v356
        %v358 = vrot.slane %v349, 4
        %v359 = vsel %vm306, 0.0, %v358
        %v360 = vrot.slane %v353, 4
        %v361 = vsel %vm306, 0.0, %v360
        %362 = vrot.lane.b32.xlu0 %v293, 96
        %v363 = vpop.permute.xlu0 %362
        %364 = vrot.lane.b32.xlu0 %v297, 96
        %v365 = vpop.permute.xlu0 %364
        %366 = vrot.lane.b32.xlu0 %v300, 96
        %v367 = vpop.permute.xlu0 %366
        %368 = vrot.lane.b32.xlu0 %v303, 96
        %v369 = vpop.permute.xlu0 %368
        %v374 = vrot.slane %v367, 4
        %v375 = vsel %vm306, %v374, %v363
        %v376 = vrot.slane %v363, 4
        %v377 = vsel %vm306, %v367, %v376
        %v379 = vunpack.c.l.s4 1983009808
        %v380 = vunpack.c.0.s8 %v379
        %v381 = vperm.slane %v375, %v380
        %v383 = vunpack.c.l.s4 1983009808
        %v384 = vunpack.c.0.s8 %v383
        %v385 = vperm.slane %v377, %v384
        %v386 = vrot.slane %v369, 4
        %v387 = vsel %vm306, %v386, %v365
        %v388 = vrot.slane %v365, 4
        %v389 = vsel %vm306, %v369, %v388
        %v391 = vunpack.c.l.s4 1983009808
        %v392 = vunpack.c.0.s8 %v391
        %v393 = vperm.slane %v387, %v392
        %v395 = vunpack.c.l.s4 1983009808
        %v396 = vunpack.c.0.s8 %v395
        %v397 = vperm.slane %v389, %v396
        %v398 = vrot.slane %v393, 4
        %v399 = vsel %vm306, %v398, %v381
        %v400 = vrot.slane %v381, 4
        %v401 = vsel %vm306, %v393, %v400
        %v403 = vunpack.c.l.s4 1934713408
        %v404 = vunpack.c.0.s8 %v403
        %v405 = vperm.slane %v399, %v404
        %v407 = vunpack.c.l.s4 1934713408
        %v408 = vunpack.c.0.s8 %v407
        %v409 = vperm.slane %v401, %v408
        %v410 = vrot.slane %v397, 4
        %v411 = vsel %vm306, %v410, %v385
        %v412 = vrot.slane %v385, 4
        %v413 = vsel %vm306, %v397, %v412
        %v415 = vunpack.c.l.s4 1934713408
        %v416 = vunpack.c.0.s8 %v415
        %v417 = vperm.slane %v411, %v416
        %v419 = vunpack.c.l.s4 1934713408
        %v420 = vunpack.c.0.s8 %v419
        %v421 = vperm.slane %v413, %v420
        %v422 = vrot.slane %v405, 4
        %v423 = vsel %vm306, 0.0, %v422
        %v424 = vrot.slane %v409, 4
        %v425 = vsel %vm306, 0.0, %v424
        %v426 = vrot.slane %v417, 4
        %v427 = vsel %vm306, 0.0, %v426
        %v428 = vrot.slane %v421, 4
        %v429 = vsel %vm306, 0.0, %v428
        %430 = vxpose.xlu0.b32.start [1/16] %v337, 128
        %431 = vxpose.xlu0.b32.cont [2/16] 0.0, 128
        %432 = vxpose.xlu0.b32.cont [3/16] 0.0, 128
        %433 = vxpose.xlu0.b32.cont [4/16] 0.0, 128
        %434 = vxpose.xlu0.b32.cont [5/16] 0.0, 128
        %435 = vxpose.xlu0.b32.cont [6/16] 0.0, 128
        %436 = vxpose.xlu0.b32.cont [7/16] 0.0, 128
        %437 = vxpose.xlu0.b32.cont [8/16] 0.0, 128
        %438 = vxpose.xlu0.b32.cont [9/16] 0.0, 128
        %439 = vxpose.xlu0.b32.cont [10/16] 0.0, 128
        %440 = vxpose.xlu0.b32.cont [11/16] 0.0, 128
        %441 = vxpose.xlu0.b32.cont [12/16] 0.0, 128
        %442 = vxpose.xlu0.b32.cont [13/16] 0.0, 128
        %443 = vxpose.xlu0.b32.cont [14/16] 0.0, 128
        %444 = vxpose.xlu0.b32.cont [15/16] 0.0, 128
        %445 = vxpose.xlu0.b32.end [16/16] 0.0, 128
        %v446 = vpop.trf.xlu0
        %v447 = vpop.trf.xlu0
        %v448 = vpop.trf.xlu0
        %v449 = vpop.trf.xlu0
        %v450 = vpop.trf.xlu0
        %v451 = vpop.trf.xlu0
        %v452 = vpop.trf.xlu0
        %v453 = vpop.trf.xlu0
        %v454 = vpop.trf.xlu0
        %v455 = vpop.trf.xlu0
        %v456 = vpop.trf.xlu0
        %v457 = vpop.trf.xlu0
        %v458 = vpop.trf.xlu0
        %v459 = vpop.trf.xlu0
        %v460 = vpop.trf.xlu0
        %v461 = vpop.trf.xlu0
        %462 = vxpose.xlu0.b32.start [1/16] %v355, 128
        %463 = vxpose.xlu0.b32.cont [2/16] 0.0, 128
        %464 = vxpose.xlu0.b32.cont [3/16] 0.0, 128
        %465 = vxpose.xlu0.b32.cont [4/16] 0.0, 128
        %466 = vxpose.xlu0.b32.cont [5/16] 0.0, 128
        %467 = vxpose.xlu0.b32.cont [6/16] 0.0, 128
        %468 = vxpose.xlu0.b32.cont [7/16] 0.0, 128
        %469 = vxpose.xlu0.b32.cont [8/16] 0.0, 128
        %470 = vxpose.xlu0.b32.cont [9/16] 0.0, 128
        %471 = vxpose.xlu0.b32.cont [10/16] 0.0, 128
        %472 = vxpose.xlu0.b32.cont [11/16] 0.0, 128
        %473 = vxpose.xlu0.b32.cont [12/16] 0.0, 128
        %474 = vxpose.xlu0.b32.cont [13/16] 0.0, 128
        %475 = vxpose.xlu0.b32.cont [14/16] 0.0, 128
        %476 = vxpose.xlu0.b32.cont [15/16] 0.0, 128
        %477 = vxpose.xlu0.b32.end [16/16] 0.0, 128
        %v478 = vpop.trf.xlu0
        %v479 = vpop.trf.xlu0
        %v480 = vpop.trf.xlu0
        %v481 = vpop.trf.xlu0
        %v482 = vpop.trf.xlu0
        %v483 = vpop.trf.xlu0
        %v484 = vpop.trf.xlu0
        %v485 = vpop.trf.xlu0
        %v486 = vpop.trf.xlu0
        %v487 = vpop.trf.xlu0
        %v488 = vpop.trf.xlu0
        %v489 = vpop.trf.xlu0
        %v490 = vpop.trf.xlu0
        %v491 = vpop.trf.xlu0
        %v492 = vpop.trf.xlu0
        %v493 = vpop.trf.xlu0
        %494 = vxpose.xlu0.b32.start [1/16] %v341, 128
        %495 = vxpose.xlu0.b32.cont [2/16] 0.0, 128
        %496 = vxpose.xlu0.b32.cont [3/16] 0.0, 128
        %497 = vxpose.xlu0.b32.cont [4/16] 0.0, 128
        %498 = vxpose.xlu0.b32.cont [5/16] 0.0, 128
        %499 = vxpose.xlu0.b32.cont [6/16] 0.0, 128
        %500 = vxpose.xlu0.b32.cont [7/16] 0.0, 128
        %501 = vxpose.xlu0.b32.cont [8/16] 0.0, 128
        %502 = vxpose.xlu0.b32.cont [9/16] 0.0, 128
        %503 = vxpose.xlu0.b32.cont [10/16] 0.0, 128
        %504 = vxpose.xlu0.b32.cont [11/16] 0.0, 128
        %505 = vxpose.xlu0.b32.cont [12/16] 0.0, 128
        %506 = vxpose.xlu0.b32.cont [13/16] 0.0, 128
        %507 = vxpose.xlu0.b32.cont [14/16] 0.0, 128
        %508 = vxpose.xlu0.b32.cont [15/16] 0.0, 128
        %509 = vxpose.xlu0.b32.end [16/16] 0.0, 128
        %v510 = vpop.trf.xlu0
        %v511 = vpop.trf.xlu0
        %v512 = vpop.trf.xlu0
        %v513 = vpop.trf.xlu0
        %v514 = vpop.trf.xlu0
        %v515 = vpop.trf.xlu0
        %v516 = vpop.trf.xlu0
        %v517 = vpop.trf.xlu0
        %v518 = vpop.trf.xlu0
        %v519 = vpop.trf.xlu0
        %v520 = vpop.trf.xlu0
        %v521 = vpop.trf.xlu0
        %v522 = vpop.trf.xlu0
        %v523 = vpop.trf.xlu0
        %v524 = vpop.trf.xlu0
        %v525 = vpop.trf.xlu0
        %526 = vxpose.xlu0.b32.start [1/16] %v357, 128
        %527 = vxpose.xlu0.b32.cont [2/16] 0.0, 128
        %528 = vxpose.xlu0.b32.cont [3/16] 0.0, 128
        %529 = vxpose.xlu0.b32.cont [4/16] 0.0, 128
        %530 = vxpose.xlu0.b32.cont [5/16] 0.0, 128
        %531 = vxpose.xlu0.b32.cont [6/16] 0.0, 128
        %532 = vxpose.xlu0.b32.cont [7/16] 0.0, 128
        %533 = vxpose.xlu0.b32.cont [8/16] 0.0, 128
        %534 = vxpose.xlu0.b32.cont [9/16] 0.0, 128
        %535 = vxpose.xlu0.b32.cont [10/16] 0.0, 128
        %536 = vxpose.xlu0.b32.cont [11/16] 0.0, 128
        %537 = vxpose.xlu0.b32.cont [12/16] 0.0, 128
        %538 = vxpose.xlu0.b32.cont [13/16] 0.0, 128
        %539 = vxpose.xlu0.b32.cont [14/16] 0.0, 128
        %540 = vxpose.xlu0.b32.cont [15/16] 0.0, 128
        %541 = vxpose.xlu0.b32.end [16/16] 0.0, 128
        %v542 = vpop.trf.xlu0
        %v543 = vpop.trf.xlu0
        %v544 = vpop.trf.xlu0
        %v545 = vpop.trf.xlu0
        %v546 = vpop.trf.xlu0
        %v547 = vpop.trf.xlu0
        %v548 = vpop.trf.xlu0
        %v549 = vpop.trf.xlu0
        %v550 = vpop.trf.xlu0
        %v551 = vpop.trf.xlu0
        %v552 = vpop.trf.xlu0
        %v553 = vpop.trf.xlu0
        %v554 = vpop.trf.xlu0
        %v555 = vpop.trf.xlu0
        %v556 = vpop.trf.xlu0
        %v557 = vpop.trf.xlu0
        %558 = vxpose.xlu0.b32.start [1/16] %v349, 128
        %559 = vxpose.xlu0.b32.cont [2/16] 0.0, 128
        %560 = vxpose.xlu0.b32.cont [3/16] 0.0, 128
        %561 = vxpose.xlu0.b32.cont [4/16] 0.0, 128
        %562 = vxpose.xlu0.b32.cont [5/16] 0.0, 128
        %563 = vxpose.xlu0.b32.cont [6/16] 0.0, 128
        %564 = vxpose.xlu0.b32.cont [7/16] 0.0, 128
        %565 = vxpose.xlu0.b32.cont [8/16] 0.0, 128
        %566 = vxpose.xlu0.b32.cont [9/16] 0.0, 128
        %567 = vxpose.xlu0.b32.cont [10/16] 0.0, 128
        %568 = vxpose.xlu0.b32.cont [11/16] 0.0, 128
        %569 = vxpose.xlu0.b32.cont [12/16] 0.0, 128
        %570 = vxpose.xlu0.b32.cont [13/16] 0.0, 128
        %571 = vxpose.xlu0.b32.cont [14/16] 0.0, 128
        %572 = vxpose.xlu0.b32.cont [15/16] 0.0, 128
        %573 = vxpose.xlu0.b32.end [16/16] 0.0, 128
        %v574 = vpop.trf.xlu0
        %v575 = vpop.trf.xlu0
        %v576 = vpop.trf.xlu0
        %v577 = vpop.trf.xlu0
        %v578 = vpop.trf.xlu0
        %v579 = vpop.trf.xlu0
        %v580 = vpop.trf.xlu0
        %v581 = vpop.trf.xlu0
        %v582 = vpop.trf.xlu0
        %v583 = vpop.trf.xlu0
        %v584 = vpop.trf.xlu0
        %v585 = vpop.trf.xlu0
        %v586 = vpop.trf.xlu0
        %v587 = vpop.trf.xlu0
        %v588 = vpop.trf.xlu0
        %v589 = vpop.trf.xlu0
        %590 = vxpose.xlu0.b32.start [1/16] %v359, 128
        %591 = vxpose.xlu0.b32.cont [2/16] 0.0, 128
        %592 = vxpose.xlu0.b32.cont [3/16] 0.0, 128
        %593 = vxpose.xlu0.b32.cont [4/16] 0.0, 128
        %594 = vxpose.xlu0.b32.cont [5/16] 0.0, 128
        %595 = vxpose.xlu0.b32.cont [6/16] 0.0, 128
        %596 = vxpose.xlu0.b32.cont [7/16] 0.0, 128
        %597 = vxpose.xlu0.b32.cont [8/16] 0.0, 128
        %598 = vxpose.xlu0.b32.cont [9/16] 0.0, 128
        %599 = vxpose.xlu0.b32.cont [10/16] 0.0, 128
        %600 = vxpose.xlu0.b32.cont [11/16] 0.0, 128
        %601 = vxpose.xlu0.b32.cont [12/16] 0.0, 128
        %602 = vxpose.xlu0.b32.cont [13/16] 0.0, 128
        %603 = vxpose.xlu0.b32.cont [14/16] 0.0, 128
        %604 = vxpose.xlu0.b32.cont [15/16] 0.0, 128
        %605 = vxpose.xlu0.b32.end [16/16] 0.0, 128
        %v606 = vpop.trf.xlu0
        %v607 = vpop.trf.xlu0
        %v608 = vpop.trf.xlu0
        %v609 = vpop.trf.xlu0
        %v610 = vpop.trf.xlu0
        %v611 = vpop.trf.xlu0
        %v612 = vpop.trf.xlu0
        %v613 = vpop.trf.xlu0
        %v614 = vpop.trf.xlu0
        %v615 = vpop.trf.xlu0
        %v616 = vpop.trf.xlu0
        %v617 = vpop.trf.xlu0
        %v618 = vpop.trf.xlu0
        %v619 = vpop.trf.xlu0
        %v620 = vpop.trf.xlu0
        %v621 = vpop.trf.xlu0
        %622 = vxpose.xlu0.b32.start [1/16] %v353, 128
        %623 = vxpose.xlu0.b32.cont [2/16] 0.0, 128
        %624 = vxpose.xlu0.b32.cont [3/16] 0.0, 128
        %625 = vxpose.xlu0.b32.cont [4/16] 0.0, 128
        %626 = vxpose.xlu0.b32.cont [5/16] 0.0, 128
        %627 = vxpose.xlu0.b32.cont [6/16] 0.0, 128
        %628 = vxpose.xlu0.b32.cont [7/16] 0.0, 128
        %629 = vxpose.xlu0.b32.cont [8/16] 0.0, 128
        %630 = vxpose.xlu0.b32.cont [9/16] 0.0, 128
        %631 = vxpose.xlu0.b32.cont [10/16] 0.0, 128
        %632 = vxpose.xlu0.b32.cont [11/16] 0.0, 128
        %633 = vxpose.xlu0.b32.cont [12/16] 0.0, 128
        %634 = vxpose.xlu0.b32.cont [13/16] 0.0, 128
        %635 = vxpose.xlu0.b32.cont [14/16] 0.0, 128
        %636 = vxpose.xlu0.b32.cont [15/16] 0.0, 128
        %637 = vxpose.xlu0.b32.end [16/16] 0.0, 128
        %v638 = vpop.trf.xlu0
        %v639 = vpop.trf.xlu0
        %v640 = vpop.trf.xlu0
        %v641 = vpop.trf.xlu0
        %v642 = vpop.trf.xlu0
        %v643 = vpop.trf.xlu0
        %v644 = vpop.trf.xlu0
        %v645 = vpop.trf.xlu0
        %v646 = vpop.trf.xlu0
        %v647 = vpop.trf.xlu0
        %v648 = vpop.trf.xlu0
        %v649 = vpop.trf.xlu0
        %v650 = vpop.trf.xlu0
        %v651 = vpop.trf.xlu0
        %v652 = vpop.trf.xlu0
        %v653 = vpop.trf.xlu0
        %654 = vxpose.xlu0.b32.start [1/16] %v361, 128
        %655 = vxpose.xlu0.b32.cont [2/16] 0.0, 128
        %656 = vxpose.xlu0.b32.cont [3/16] 0.0, 128
        %657 = vxpose.xlu0.b32.cont [4/16] 0.0, 128
        %658 = vxpose.xlu0.b32.cont [5/16] 0.0, 128
        %659 = vxpose.xlu0.b32.cont [6/16] 0.0, 128
        %660 = vxpose.xlu0.b32.cont [7/16] 0.0, 128
        %661 = vxpose.xlu0.b32.cont [8/16] 0.0, 128
        %662 = vxpose.xlu0.b32.cont [9/16] 0.0, 128
        %663 = vxpose.xlu0.b32.cont [10/16] 0.0, 128
        %664 = vxpose.xlu0.b32.cont [11/16] 0.0, 128
        %665 = vxpose.xlu0.b32.cont [12/16] 0.0, 128
        %666 = vxpose.xlu0.b32.cont [13/16] 0.0, 128
        %667 = vxpose.xlu0.b32.cont [14/16] 0.0, 128
        %668 = vxpose.xlu0.b32.cont [15/16] 0.0, 128
        %669 = vxpose.xlu0.b32.end [16/16] 0.0, 128
        %v670 = vpop.trf.xlu0
        %v671 = vpop.trf.xlu0
        %v672 = vpop.trf.xlu0
        %v673 = vpop.trf.xlu0
        %v674 = vpop.trf.xlu0
        %v675 = vpop.trf.xlu0
        %v676 = vpop.trf.xlu0
        %v677 = vpop.trf.xlu0
        %v678 = vpop.trf.xlu0
        %v679 = vpop.trf.xlu0
        %v680 = vpop.trf.xlu0
        %v681 = vpop.trf.xlu0
        %v682 = vpop.trf.xlu0
        %v683 = vpop.trf.xlu0
        %v684 = vpop.trf.xlu0
        %v685 = vpop.trf.xlu0
        %v686 = vrot.slane %v510, 4
        %v687 = vsel %vm306, %v686, %v446
        %v688 = vrot.slane %v446, 4
        %v689 = vsel %vm306, %v510, %v688
        %v691 = vunpack.c.l.s4 1983009808
        %v692 = vunpack.c.0.s8 %v691
        %v693 = vperm.slane %v687, %v692
        %v695 = vunpack.c.l.s4 1983009808
        %v696 = vunpack.c.0.s8 %v695
        %v697 = vperm.slane %v689, %v696
        %v698 = vrot.slane %v542, 4
        %v699 = vsel %vm306, %v698, %v478
        %v700 = vrot.slane %v478, 4
        %v701 = vsel %vm306, %v542, %v700
        %v703 = vunpack.c.l.s4 1983009808
        %v704 = vunpack.c.0.s8 %v703
        %v705 = vperm.slane %v699, %v704
        %v707 = vunpack.c.l.s4 1983009808
        %v708 = vunpack.c.0.s8 %v707
        %v709 = vperm.slane %v701, %v708
        %v710 = vrot.slane %v638, 4
        %v711 = vsel %vm306, %v710, %v574
        %v712 = vrot.slane %v574, 4
        %v713 = vsel %vm306, %v638, %v712
        %v715 = vunpack.c.l.s4 1983009808
        %v716 = vunpack.c.0.s8 %v715
        %v717 = vperm.slane %v711, %v716
        %v719 = vunpack.c.l.s4 1983009808
        %v720 = vunpack.c.0.s8 %v719
        %v721 = vperm.slane %v713, %v720
        %v722 = vrot.slane %v670, 4
        %v723 = vsel %vm306, %v722, %v606
        %v724 = vrot.slane %v606, 4
        %v725 = vsel %vm306, %v670, %v724
        %v727 = vunpack.c.l.s4 1983009808
        %v728 = vunpack.c.0.s8 %v727
        %v729 = vperm.slane %v723, %v728
        %v731 = vunpack.c.l.s4 1983009808
        %v732 = vunpack.c.0.s8 %v731
        %v733 = vperm.slane %v725, %v732
        %v734 = vrot.slane %v705, 4
        %v735 = vsel %vm306, %v734, %v693
        %v736 = vrot.slane %v693, 4
        %v737 = vsel %vm306, %v705, %v736
        %v739 = vunpack.c.l.s4 1934713408
        %v740 = vunpack.c.0.s8 %v739
        %v741 = vperm.slane %v735, %v740
        %v743 = vunpack.c.l.s4 1934713408
        %v744 = vunpack.c.0.s8 %v743
        %v745 = vperm.slane %v737, %v744
        %v746 = vrot.slane %v709, 4
        %v747 = vsel %vm306, %v746, %v697
        %v748 = vrot.slane %v697, 4
        %v749 = vsel %vm306, %v709, %v748
        %v751 = vunpack.c.l.s4 1934713408
        %v752 = vunpack.c.0.s8 %v751
        %v753 = vperm.slane %v747, %v752
        %v755 = vunpack.c.l.s4 1934713408
        %v756 = vunpack.c.0.s8 %v755
        %v757 = vperm.slane %v749, %v756
        %v758 = vrot.slane %v729, 4
        %v759 = vsel %vm306, %v758, %v717
        %v760 = vrot.slane %v717, 4
        %v761 = vsel %vm306, %v729, %v760
        %v763 = vunpack.c.l.s4 1934713408
        %v764 = vunpack.c.0.s8 %v763
        %v765 = vperm.slane %v759, %v764
        %v767 = vunpack.c.l.s4 1934713408
        %v768 = vunpack.c.0.s8 %v767
        %v769 = vperm.slane %v761, %v768
        %v770 = vrot.slane %v733, 4
        %v771 = vsel %vm306, %v770, %v721
        %v772 = vrot.slane %v721, 4
        %v773 = vsel %vm306, %v733, %v772
        %v775 = vunpack.c.l.s4 1934713408
        %v776 = vunpack.c.0.s8 %v775
        %v777 = vperm.slane %v771, %v776
        %v779 = vunpack.c.l.s4 1934713408
        %v780 = vunpack.c.0.s8 %v779
        %v781 = vperm.slane %v773, %v780
        %v782 = vrot.slane %v765, 4
        %v783 = vsel %vm306, %v782, %v741
        %v784 = vrot.slane %v741, 4
        %v785 = vsel %vm306, %v765, %v784
        %v786 = vrot.slane %v769, 4
        %v787 = vsel %vm306, %v786, %v745
        %v788 = vrot.slane %v745, 4
        %v789 = vsel %vm306, %v769, %v788
        %v790 = vrot.slane %v777, 4
        %v791 = vsel %vm306, %v790, %v753
        %v792 = vrot.slane %v753, 4
        %v793 = vsel %vm306, %v777, %v792
        %v794 = vrot.slane %v781, 4
        %v795 = vsel %vm306, %v794, %v757
        %v796 = vrot.slane %v757, 4
        %v797 = vsel %vm306, %v781, %v796
        %798 = vxpose.xlu0.b32.start [1/16] %v783, 128
        %799 = vxpose.xlu0.b32.cont [2/16] 0.0, 128
        %800 = vxpose.xlu0.b32.cont [3/16] 0.0, 128
        %801 = vxpose.xlu0.b32.cont [4/16] 0.0, 128
        %802 = vxpose.xlu0.b32.cont [5/16] 0.0, 128
        %803 = vxpose.xlu0.b32.cont [6/16] 0.0, 128
        %804 = vxpose.xlu0.b32.cont [7/16] 0.0, 128
        %805 = vxpose.xlu0.b32.cont [8/16] 0.0, 128
        %806 = vxpose.xlu0.b32.cont [9/16] 0.0, 128
        %807 = vxpose.xlu0.b32.cont [10/16] 0.0, 128
        %808 = vxpose.xlu0.b32.cont [11/16] 0.0, 128
        %809 = vxpose.xlu0.b32.cont [12/16] 0.0, 128
        %810 = vxpose.xlu0.b32.cont [13/16] 0.0, 128
        %811 = vxpose.xlu0.b32.cont [14/16] 0.0, 128
        %812 = vxpose.xlu0.b32.cont [15/16] 0.0, 128
        %813 = vxpose.xlu0.b32.end [16/16] 0.0, 128
        %v814 = vpop.trf.xlu0
        %v815 = vpop.trf.xlu0
        %v816 = vpop.trf.xlu0
        %v817 = vpop.trf.xlu0
        %v818 = vpop.trf.xlu0
        %v819 = vpop.trf.xlu0
        %v820 = vpop.trf.xlu0
        %v821 = vpop.trf.xlu0
        %v822 = vpop.trf.xlu0
        %v823 = vpop.trf.xlu0
        %v824 = vpop.trf.xlu0
        %v825 = vpop.trf.xlu0
        %v826 = vpop.trf.xlu0
        %v827 = vpop.trf.xlu0
        %v828 = vpop.trf.xlu0
        %v829 = vpop.trf.xlu0
        %830 = vxpose.xlu0.b32.start [1/16] %v785, 128
        %831 = vxpose.xlu0.b32.cont [2/16] 0.0, 128
        %832 = vxpose.xlu0.b32.cont [3/16] 0.0, 128
        %833 = vxpose.xlu0.b32.cont [4/16] 0.0, 128
        %834 = vxpose.xlu0.b32.cont [5/16] 0.0, 128
        %835 = vxpose.xlu0.b32.cont [6/16] 0.0, 128
        %836 = vxpose.xlu0.b32.cont [7/16] 0.0, 128
        %837 = vxpose.xlu0.b32.cont [8/16] 0.0, 128
        %838 = vxpose.xlu0.b32.cont [9/16] 0.0, 128
        %839 = vxpose.xlu0.b32.cont [10/16] 0.0, 128
        %840 = vxpose.xlu0.b32.cont [11/16] 0.0, 128
        %841 = vxpose.xlu0.b32.cont [12/16] 0.0, 128
        %842 = vxpose.xlu0.b32.cont [13/16] 0.0, 128
        %843 = vxpose.xlu0.b32.cont [14/16] 0.0, 128
        %844 = vxpose.xlu0.b32.cont [15/16] 0.0, 128
        %845 = vxpose.xlu0.b32.end [16/16] 0.0, 128
        %v846 = vpop.trf.xlu0
        %v847 = vpop.trf.xlu0
        %v848 = vpop.trf.xlu0
        %v849 = vpop.trf.xlu0
        %v850 = vpop.trf.xlu0
        %v851 = vpop.trf.xlu0
        %v852 = vpop.trf.xlu0
        %v853 = vpop.trf.xlu0
        %v854 = vpop.trf.xlu0
        %v855 = vpop.trf.xlu0
        %v856 = vpop.trf.xlu0
        %v857 = vpop.trf.xlu0
        %v858 = vpop.trf.xlu0
        %v859 = vpop.trf.xlu0
        %v860 = vpop.trf.xlu0
        %v861 = vpop.trf.xlu0
        %862 = vxpose.xlu0.b32.start [1/16] %v787, 128
        %863 = vxpose.xlu0.b32.cont [2/16] 0.0, 128
        %864 = vxpose.xlu0.b32.cont [3/16] 0.0, 128
        %865 = vxpose.xlu0.b32.cont [4/16] 0.0, 128
        %866 = vxpose.xlu0.b32.cont [5/16] 0.0, 128
        %867 = vxpose.xlu0.b32.cont [6/16] 0.0, 128
        %868 = vxpose.xlu0.b32.cont [7/16] 0.0, 128
        %869 = vxpose.xlu0.b32.cont [8/16] 0.0, 128
        %870 = vxpose.xlu0.b32.cont [9/16] 0.0, 128
        %871 = vxpose.xlu0.b32.cont [10/16] 0.0, 128
        %872 = vxpose.xlu0.b32.cont [11/16] 0.0, 128
        %873 = vxpose.xlu0.b32.cont [12/16] 0.0, 128
        %874 = vxpose.xlu0.b32.cont [13/16] 0.0, 128
        %875 = vxpose.xlu0.b32.cont [14/16] 0.0, 128
        %876 = vxpose.xlu0.b32.cont [15/16] 0.0, 128
        %877 = vxpose.xlu0.b32.end [16/16] 0.0, 128
        %v878 = vpop.trf.xlu0
        %v879 = vpop.trf.xlu0
        %v880 = vpop.trf.xlu0
        %v881 = vpop.trf.xlu0
        %v882 = vpop.trf.xlu0
        %v883 = vpop.trf.xlu0
        %v884 = vpop.trf.xlu0
        %v885 = vpop.trf.xlu0
        %v886 = vpop.trf.xlu0
        %v887 = vpop.trf.xlu0
        %v888 = vpop.trf.xlu0
        %v889 = vpop.trf.xlu0
        %v890 = vpop.trf.xlu0
        %v891 = vpop.trf.xlu0
        %v892 = vpop.trf.xlu0
        %v893 = vpop.trf.xlu0
        %894 = vxpose.xlu0.b32.start [1/16] %v789, 128
        %895 = vxpose.xlu0.b32.cont [2/16] 0.0, 128
        %896 = vxpose.xlu0.b32.cont [3/16] 0.0, 128
        %897 = vxpose.xlu0.b32.cont [4/16] 0.0, 128
        %898 = vxpose.xlu0.b32.cont [5/16] 0.0, 128
        %899 = vxpose.xlu0.b32.cont [6/16] 0.0, 128
        %900 = vxpose.xlu0.b32.cont [7/16] 0.0, 128
        %901 = vxpose.xlu0.b32.cont [8/16] 0.0, 128
        %902 = vxpose.xlu0.b32.cont [9/16] 0.0, 128
        %903 = vxpose.xlu0.b32.cont [10/16] 0.0, 128
        %904 = vxpose.xlu0.b32.cont [11/16] 0.0, 128
        %905 = vxpose.xlu0.b32.cont [12/16] 0.0, 128
        %906 = vxpose.xlu0.b32.cont [13/16] 0.0, 128
        %907 = vxpose.xlu0.b32.cont [14/16] 0.0, 128
        %908 = vxpose.xlu0.b32.cont [15/16] 0.0, 128
        %909 = vxpose.xlu0.b32.end [16/16] 0.0, 128
        %v910 = vpop.trf.xlu0
        %v911 = vpop.trf.xlu0
        %v912 = vpop.trf.xlu0
        %v913 = vpop.trf.xlu0
        %v914 = vpop.trf.xlu0
        %v915 = vpop.trf.xlu0
        %v916 = vpop.trf.xlu0
        %v917 = vpop.trf.xlu0
        %v918 = vpop.trf.xlu0
        %v919 = vpop.trf.xlu0
        %v920 = vpop.trf.xlu0
        %v921 = vpop.trf.xlu0
        %v922 = vpop.trf.xlu0
        %v923 = vpop.trf.xlu0
        %v924 = vpop.trf.xlu0
        %v925 = vpop.trf.xlu0
        %926 = vxpose.xlu0.b32.start [1/16] %v791, 128
        %927 = vxpose.xlu0.b32.cont [2/16] 0.0, 128
        %928 = vxpose.xlu0.b32.cont [3/16] 0.0, 128
        %929 = vxpose.xlu0.b32.cont [4/16] 0.0, 128
        %930 = vxpose.xlu0.b32.cont [5/16] 0.0, 128
        %931 = vxpose.xlu0.b32.cont [6/16] 0.0, 128
        %932 = vxpose.xlu0.b32.cont [7/16] 0.0, 128
        %933 = vxpose.xlu0.b32.cont [8/16] 0.0, 128
        %934 = vxpose.xlu0.b32.cont [9/16] 0.0, 128
        %935 = vxpose.xlu0.b32.cont [10/16] 0.0, 128
        %936 = vxpose.xlu0.b32.cont [11/16] 0.0, 128
        %937 = vxpose.xlu0.b32.cont [12/16] 0.0, 128
        %938 = vxpose.xlu0.b32.cont [13/16] 0.0, 128
        %939 = vxpose.xlu0.b32.cont [14/16] 0.0, 128
        %940 = vxpose.xlu0.b32.cont [15/16] 0.0, 128
        %941 = vxpose.xlu0.b32.end [16/16] 0.0, 128
        %v942 = vpop.trf.xlu0
        %v943 = vpop.trf.xlu0
        %v944 = vpop.trf.xlu0
        %v945 = vpop.trf.xlu0
        %v946 = vpop.trf.xlu0
        %v947 = vpop.trf.xlu0
        %v948 = vpop.trf.xlu0
        %v949 = vpop.trf.xlu0
        %v950 = vpop.trf.xlu0
        %v951 = vpop.trf.xlu0
        %v952 = vpop.trf.xlu0
        %v953 = vpop.trf.xlu0
        %v954 = vpop.trf.xlu0
        %v955 = vpop.trf.xlu0
        %v956 = vpop.trf.xlu0
        %v957 = vpop.trf.xlu0
        %958 = vxpose.xlu0.b32.start [1/16] %v793, 128
        %959 = vxpose.xlu0.b32.cont [2/16] 0.0, 128
        %960 = vxpose.xlu0.b32.cont [3/16] 0.0, 128
        %961 = vxpose.xlu0.b32.cont [4/16] 0.0, 128
        %962 = vxpose.xlu0.b32.cont [5/16] 0.0, 128
        %963 = vxpose.xlu0.b32.cont [6/16] 0.0, 128
        %964 = vxpose.xlu0.b32.cont [7/16] 0.0, 128
        %965 = vxpose.xlu0.b32.cont [8/16] 0.0, 128
        %966 = vxpose.xlu0.b32.cont [9/16] 0.0, 128
        %967 = vxpose.xlu0.b32.cont [10/16] 0.0, 128
        %968 = vxpose.xlu0.b32.cont [11/16] 0.0, 128
        %969 = vxpose.xlu0.b32.cont [12/16] 0.0, 128
        %970 = vxpose.xlu0.b32.cont [13/16] 0.0, 128
        %971 = vxpose.xlu0.b32.cont [14/16] 0.0, 128
        %972 = vxpose.xlu0.b32.cont [15/16] 0.0, 128
        %973 = vxpose.xlu0.b32.end [16/16] 0.0, 128
        %v974 = vpop.trf.xlu0
        %v975 = vpop.trf.xlu0
        %v976 = vpop.trf.xlu0
        %v977 = vpop.trf.xlu0
        %v978 = vpop.trf.xlu0
        %v979 = vpop.trf.xlu0
        %v980 = vpop.trf.xlu0
        %v981 = vpop.trf.xlu0
        %v982 = vpop.trf.xlu0
        %v983 = vpop.trf.xlu0
        %v984 = vpop.trf.xlu0
        %v985 = vpop.trf.xlu0
        %v986 = vpop.trf.xlu0
        %v987 = vpop.trf.xlu0
        %v988 = vpop.trf.xlu0
        %v989 = vpop.trf.xlu0
        %990 = vxpose.xlu0.b32.start [1/16] %v795, 128
        %991 = vxpose.xlu0.b32.cont [2/16] 0.0, 128
        %992 = vxpose.xlu0.b32.cont [3/16] 0.0, 128
        %993 = vxpose.xlu0.b32.cont [4/16] 0.0, 128
        %994 = vxpose.xlu0.b32.cont [5/16] 0.0, 128
        %995 = vxpose.xlu0.b32.cont [6/16] 0.0, 128
        %996 = vxpose.xlu0.b32.cont [7/16] 0.0, 128
        %997 = vxpose.xlu0.b32.cont [8/16] 0.0, 128
        %998 = vxpose.xlu0.b32.cont [9/16] 0.0, 128
        %999 = vxpose.xlu0.b32.cont [10/16] 0.0, 128
        %1000 = vxpose.xlu0.b32.cont [11/16] 0.0, 128
        %1001 = vxpose.xlu0.b32.cont [12/16] 0.0, 128
        %1002 = vxpose.xlu0.b32.cont [13/16] 0.0, 128
        %1003 = vxpose.xlu0.b32.cont [14/16] 0.0, 128
        %1004 = vxpose.xlu0.b32.cont [15/16] 0.0, 128
        %1005 = vxpose.xlu0.b32.end [16/16] 0.0, 128
        %v1006 = vpop.trf.xlu0
        %v1007 = vpop.trf.xlu0
        %v1008 = vpop.trf.xlu0
        %v1009 = vpop.trf.xlu0
        %v1010 = vpop.trf.xlu0
        %v1011 = vpop.trf.xlu0
        %v1012 = vpop.trf.xlu0
        %v1013 = vpop.trf.xlu0
        %v1014 = vpop.trf.xlu0
        %v1015 = vpop.trf.xlu0
        %v1016 = vpop.trf.xlu0
        %v1017 = vpop.trf.xlu0
        %v1018 = vpop.trf.xlu0
        %v1019 = vpop.trf.xlu0
        %v1020 = vpop.trf.xlu0
        %v1021 = vpop.trf.xlu0
        %1022 = vxpose.xlu0.b32.start [1/16] %v797, 128
        %1023 = vxpose.xlu0.b32.cont [2/16] 0.0, 128
        %1024 = vxpose.xlu0.b32.cont [3/16] 0.0, 128
        %1025 = vxpose.xlu0.b32.cont [4/16] 0.0, 128
        %1026 = vxpose.xlu0.b32.cont [5/16] 0.0, 128
        %1027 = vxpose.xlu0.b32.cont [6/16] 0.0, 128
        %1028 = vxpose.xlu0.b32.cont [7/16] 0.0, 128
        %1029 = vxpose.xlu0.b32.cont [8/16] 0.0, 128
        %1030 = vxpose.xlu0.b32.cont [9/16] 0.0, 128
        %1031 = vxpose.xlu0.b32.cont [10/16] 0.0, 128
        %1032 = vxpose.xlu0.b32.cont [11/16] 0.0, 128
        %1033 = vxpose.xlu0.b32.cont [12/16] 0.0, 128
        %1034 = vxpose.xlu0.b32.cont [13/16] 0.0, 128
        %1035 = vxpose.xlu0.b32.cont [14/16] 0.0, 128
        %1036 = vxpose.xlu0.b32.cont [15/16] 0.0, 128
        %1037 = vxpose.xlu0.b32.end [16/16] 0.0, 128
        %v1038 = vpop.trf.xlu0
        %v1039 = vpop.trf.xlu0
        %v1040 = vpop.trf.xlu0
        %v1041 = vpop.trf.xlu0
        %v1042 = vpop.trf.xlu0
        %v1043 = vpop.trf.xlu0
        %v1044 = vpop.trf.xlu0
        %v1045 = vpop.trf.xlu0
        %v1046 = vpop.trf.xlu0
        %v1047 = vpop.trf.xlu0
        %v1048 = vpop.trf.xlu0
        %v1049 = vpop.trf.xlu0
        %v1050 = vpop.trf.xlu0
        %v1051 = vpop.trf.xlu0
        %v1052 = vpop.trf.xlu0
        %v1053 = vpop.trf.xlu0
        %v1054 = vrot.slane %v878, 4
        %v1055 = vsel %vm306, %v1054, %v814
        %v1057 = vunpack.c.l.s4 1983009808
        %v1058 = vunpack.c.0.s8 %v1057
        %v1059 = vperm.slane %v1055, %v1058
        %v1060 = vrot.slane %v910, 4
        %v1061 = vsel %vm306, %v1060, %v846
        %v1063 = vunpack.c.l.s4 1983009808
        %v1064 = vunpack.c.0.s8 %v1063
        %v1065 = vperm.slane %v1061, %v1064
        %v1066 = vrot.slane %v1006, 4
        %v1067 = vsel %vm306, %v1066, %v942
        %v1069 = vunpack.c.l.s4 1983009808
        %v1070 = vunpack.c.0.s8 %v1069
        %v1071 = vperm.slane %v1067, %v1070
        %v1072 = vrot.slane %v1038, 4
        %v1073 = vsel %vm306, %v1072, %v974
        %v1075 = vunpack.c.l.s4 1983009808
        %v1076 = vunpack.c.0.s8 %v1075
        %v1077 = vperm.slane %v1073, %v1076
        %v1078 = vrot.slane %v1065, 4
        %v1079 = vsel %vm306, %v1078, %v1059
        %v1080 = vrot.slane %v1059, 4
        %v1081 = vsel %vm306, %v1065, %v1080
        %v1083 = vunpack.c.l.s4 1934713408
        %v1084 = vunpack.c.0.s8 %v1083
        %v1085 = vperm.slane %v1079, %v1084
        %v1087 = vunpack.c.l.s4 1934713408
        %v1088 = vunpack.c.0.s8 %v1087
        %v1089 = vperm.slane %v1081, %v1088
        %v1090 = vrot.slane %v1077, 4
        %v1091 = vsel %vm306, %v1090, %v1071
        %v1092 = vrot.slane %v1071, 4
        %v1093 = vsel %vm306, %v1077, %v1092
        %v1095 = vunpack.c.l.s4 1934713408
        %v1096 = vunpack.c.0.s8 %v1095
        %v1097 = vperm.slane %v1091, %v1096
        %v1099 = vunpack.c.l.s4 1934713408
        %v1100 = vunpack.c.0.s8 %v1099
        %v1101 = vperm.slane %v1093, %v1100
        %v1102 = vrot.slane %v1097, 4
        %v1103 = vsel %vm306, %v1102, %v1085
        %v1104 = vrot.slane %v1085, 4
        %v1105 = vsel %vm306, %v1097, %v1104
        %v1106 = vrot.slane %v1101, 4
        %v1107 = vsel %vm306, %v1106, %v1089
        %v1108 = vrot.slane %v1089, 4
        %v1109 = vsel %vm306, %v1101, %v1108
        %vm1110 = vcmask 64512
        %1111 = vst.msk [vmem:[%s254] sm:$0xff] %vm1110, %v1103
        %1112 = vst.msk [vmem:[%s254 + $0x8] sm:$0xff] %vm1110, %v1105
        %1113 = vst.msk [vmem:[%s254 + $0x10] sm:$0xff] %vm1110, %v1107
        %1114 = vst.msk [vmem:[%s254 + $0x18] sm:$0xff] %vm1110, %v1109
        %v1115 = vsel %vm306, %v424, %v405
        %v1117 = vunpack.c.l.s4 1983009808
        %v1118 = vunpack.c.0.s8 %v1117
        %v1119 = vperm.slane %v1115, %v1118
        %v1120 = vrot.slane %v425, 4
        %v1121 = vsel %vm306, %v1120, %v423
        %v1123 = vunpack.c.l.s4 1983009808
        %v1124 = vunpack.c.0.s8 %v1123
        %v1125 = vperm.slane %v1121, %v1124
        %v1126 = vsel %vm306, %v428, %v417
        %v1128 = vunpack.c.l.s4 1983009808
        %v1129 = vunpack.c.0.s8 %v1128
        %v1130 = vperm.slane %v1126, %v1129
        %v1131 = vrot.slane %v429, 4
        %v1132 = vsel %vm306, %v1131, %v427
        %v1134 = vunpack.c.l.s4 1983009808
        %v1135 = vunpack.c.0.s8 %v1134
        %v1136 = vperm.slane %v1132, %v1135
        %v1137 = vrot.slane %v1125, 4
        %v1138 = vsel %vm306, %v1137, %v1119
        %v1139 = vrot.slane %v1119, 4
        %v1140 = vsel %vm306, %v1125, %v1139
        %v1142 = vunpack.c.l.s4 1934713408
        %v1143 = vunpack.c.0.s8 %v1142
        %v1144 = vperm.slane %v1138, %v1143
        %v1146 = vunpack.c.l.s4 1934713408
        %v1147 = vunpack.c.0.s8 %v1146
        %v1148 = vperm.slane %v1140, %v1147
        %v1149 = vrot.slane %v1136, 4
        %v1150 = vsel %vm306, %v1149, %v1130
        %v1151 = vrot.slane %v1130, 4
        %v1152 = vsel %vm306, %v1136, %v1151
        %v1154 = vunpack.c.l.s4 1934713408
        %v1155 = vunpack.c.0.s8 %v1154
        %v1156 = vperm.slane %v1150, %v1155
        %v1158 = vunpack.c.l.s4 1934713408
        %v1159 = vunpack.c.0.s8 %v1158
        %v1160 = vperm.slane %v1152, %v1159
        %v1161 = vrot.slane %v1156, 4
        %v1162 = vsel %vm306, %v1161, %v1144
        %v1163 = vrot.slane %v1144, 4
        %v1164 = vsel %vm306, %v1156, %v1163
        %v1165 = vrot.slane %v1160, 4
        %v1166 = vsel %vm306, %v1165, %v1148
        %v1167 = vrot.slane %v1148, 4
        %v1168 = vsel %vm306, %v1160, %v1167
        %1169 = vst.msk [vmem:[%s261] sm:$0xff] %vm1110, %v1162
        %1170 = vst.msk [vmem:[%s261 + $0x8] sm:$0xff] %vm1110, %v1164
        %1171 = vst.msk [vmem:[%s261 + $0x10] sm:$0xff] %vm1110, %v1166
        %1172 = vst.msk [vmem:[%s261 + $0x18] sm:$0xff] %vm1110, %v1168
        %s1173 = sand.u32 %s118, 1
        %s1174 = scalar_lea.sflag [#allocation4], %s1173
        %s1175 = sand.u32 %s118, 1
        %s1176 = smul.addr %s1175, 32
        %s1177 = scalar_lea.vmem [#allocation7], %s1176
        %s1178 = sand.u32 %s146, 1
        %s1179 = scalar_lea.sflag [#allocation9], %s1178
        %s1180 = sand.u32 %s146, 1
        %s1181 = smul.addr %s1180, 32
        %s1182 = scalar_lea.vmem [#allocation8], %s1181
        // Predicated region
        $region41: #{tpu_custom_call.1} parent=31 // pred_check
          %p1183 = pneg %p128
        $region42: #{tpu_custom_call.1} parent=31 // pred_check_branch
          %1185 = sbr.rel (%p1183) target = $region44
        $region43: #{tpu_custom_call.1} parent=31 // pred_region
          %1187 = vsyncadd %s1174, 0
          %s1188 = smul.addr %s30, 4
          %s1189 = sadd.s32 %s31, %s1188
          %s1190 = smul.addr %s1189, 8
          %s1191 = scalar_lea.hbm %s3, %s1190
          %s1192 = sshll.u32 %s1177, 4
          %s1193 = int_to_ptr.vmem [resolvable:$true] %s1192
          %s1194 = sshll.u32 %s1191, 4
          %s1195 = int_to_ptr.hbm [resolvable:$true] %s1194
          %1200 = dma.vmem_to_hbm [thread:$0]  %s1193, 512, %s1195, %s1174, 128, 128, 8
        $region44: #{tpu_custom_call.1} parent=31 // pred_fallthru
          _
        // Predicated region
        $region45: #{tpu_custom_call.1} parent=31 // pred_check
          %p1201 = pneg %p156
        $region46: #{tpu_custom_call.1} parent=31 // pred_check_branch
          %1203 = sbr.rel (%p1201) target = $region48
        $region47: #{tpu_custom_call.1} parent=31 // pred_region
          %1205 = vsyncadd %s1179, 0
          %s1206 = smul.addr %s30, 4
          %s1207 = sadd.s32 %s31, %s1206
          %s1208 = smul.addr %s1207, 8
          %s1209 = scalar_lea.hbm %s4, %s1208
          %s1210 = sshll.u32 %s1182, 4
          %s1211 = int_to_ptr.vmem [resolvable:$true] %s1210
          %s1212 = sshll.u32 %s1209, 4
          %s1213 = int_to_ptr.hbm [resolvable:$true] %s1212
          %1218 = dma.vmem_to_hbm [thread:$0]  %s1211, 512, %s1213, %s1179, 128, 128, 8
        $region48: #{tpu_custom_call.1} parent=31 // pred_fallthru
          _
      $region32: #{tpu_custom_call.1} parent=5 // pred_fallthru
        _
      %p1219 = scmp.le.s32.totalorder 2, %s21
      // Predicated region
      $region49: #{tpu_custom_call.1} parent=5 // pred_check
        %p1220 = pneg %p1219
      $region50: #{tpu_custom_call.1} parent=5 // pred_check_branch
        %1222 = sbr.rel (%p1220) target = $region52
      $region51: #{tpu_custom_call.1} parent=5 // pred_region
        %s1223 = ssub.s32 %s21, 2
        // Predicated region
        $region53: #{tpu_custom_call.1} parent=51 // pred_check
          %p1224 = pneg %p134
        $region54: #{tpu_custom_call.1} parent=51 // pred_check_branch
          %1226 = sbr.rel (%p1224) target = $region56
        $region55: #{tpu_custom_call.1} parent=51 // pred_region
          %s1227 = sand.u32 %s119, 1
          %s1228 = scalar_lea.sflag [#allocation4], %s1227
          %s1229 = sand.u32 %s119, 1
          %s1230 = smul.addr %s1229, 32
          %s1231 = scalar_lea.vmem [#allocation7], %s1230
          %1233 = dma.done %s1228, 512
        $region56: #{tpu_custom_call.1} parent=51 // pred_fallthru
          _
        // Predicated region
        $region57: #{tpu_custom_call.1} parent=51 // pred_check
          %p1234 = pneg %p162
        $region58: #{tpu_custom_call.1} parent=51 // pred_check_branch
          %1236 = sbr.rel (%p1234) target = $region60
        $region59: #{tpu_custom_call.1} parent=51 // pred_region
          %s1237 = sand.u32 %s147, 1
          %s1238 = scalar_lea.sflag [#allocation9], %s1237
          %s1239 = sand.u32 %s147, 1
          %s1240 = smul.addr %s1239, 32
          %s1241 = scalar_lea.vmem [#allocation8], %s1240
          %1243 = dma.done %s1238, 512
        $region60: #{tpu_custom_call.1} parent=51 // pred_fallthru
          _
      $region52: #{tpu_custom_call.1} parent=5 // pred_fallthru
        _
    $region6: #{tpu_custom_call.1} parent=1 // loop_footer
      %s25 = sadd.s32 1, %s21
    $region7: #{tpu_custom_call.1} parent=1 // loop_footer_branch
      %20 = sbr.rel target = $region3
    $region8: #{tpu_custom_call.1} parent=1 // loop_exit
      _
    %1244 = vsyncpa [#allocation3], 1
    %s1245 = scalar_lea.sflag [#allocation3], 1
    %1246 = vsyncpa %s1245, 1
    %1247 = vsyncpa [#allocation6], 1
    %1248 = vsyncpa [#allocation4], 1
    %s1249 = scalar_lea.sflag [#allocation4], 1
    %1250 = vsyncpa %s1249, 1
    %1251 = vsyncpa [#allocation9], 1
    %s1252 = scalar_lea.sflag [#allocation9], 1
    %1253 = vsyncpa %s1252, 1

</llo_original>
